<compile_context>
chip_gen: v6e
topology: v6e:2x2x1
jax: 0.10.0
libtpu: 0.0.40
codegen_flags: <defaults>
</compile_context>

<pallas_src>
import functools
import math

import jax
import jax.numpy as jnp
from jax import lax
from jax.experimental import pallas as pl
from jax.experimental.pallas import tpu as pltpu


# ---------------------------------------------------------------------------
# Hardware-aware VMEM budgeting
# ---------------------------------------------------------------------------
def _vmem_capacity_bytes():
    try:
        return int(pltpu.get_tpu_info().vmem_capacity_bytes)
    except Exception:
        return 64 << 20  # conservative fallback: v7x per-TC VMEM


def _vmem_budget_bytes():
    # Never claim the whole physical VMEM: ~25% headroom.
    # v7x (64 MiB) -> ~48 MiB; v5e/v6e (128 MiB) -> ~96 MiB.
    return int(0.75 * _vmem_capacity_bytes())


# ---------------------------------------------------------------------------
# Tiled linear (projection) kernel
# ---------------------------------------------------------------------------
def _linear_kernel(x_ref, w_ref, b_ref, o_ref, acc_ref):
    @pl.when(pl.program_id(2) == 0)
    def _():
        acc_ref[...] = jnp.zeros_like(acc_ref)

    # Feed the MXU in the native input dtype (bf16 stays bf16), accumulate f32.
    acc_ref[...] += jnp.dot(x_ref[...], w_ref[...],
                            preferred_element_type=jnp.float32)

    @pl.when(pl.program_id(2) == pl.num_programs(2) - 1)
    def _():
        o_ref[...] = (acc_ref[...] + b_ref[...].astype(jnp.float32)
                      ).astype(o_ref.dtype)


def _pick_tile(dim, preferred, align):
    """Largest tile <= preferred that is a multiple of `align` and divides dim."""
    if dim <= preferred:
        return dim
    t = (preferred // align) * align
    while t >= align:
        if dim % t == 0:
            return t
        t -= align
    return dim  # fall back to the full dimension


def pallas_linear(x2d, w, bias):
    """x2d: (M, K), w: (K, N), bias: (N,) -> (M, N), f32 accumulation."""
    m, k_dim = x2d.shape
    n = w.shape[1]
    item = x2d.dtype.itemsize
    sub_align = max(8, 8 * (4 // item))        # 8 for f32, 16 for bf16, 32 for i8
    budget = _vmem_budget_bytes()
    tn_pref = 512 if budget >= (72 << 20) else 256   # 512-wide only when VMEM plentiful
    tm = _pick_tile(m, 512, sub_align)
    tn = _pick_tile(n, tn_pref, 128)
    tk = _pick_tile(k_dim, 512, 128)
    grid = (m // tm, n // tn, k_dim // tk)

    per_step = (2 * (tm * tk + tk * tn) * item     # double-buffered x / w tiles
                + tm * tn * (item + 4)             # output block + f32 accumulator
                + 2 * tn * item)                   # bias
    vmem_limit = int(min(budget, max(32 << 20, per_step + (8 << 20))))

    return pl.pallas_call(
        _linear_kernel,
        out_shape=jax.ShapeDtypeStruct((m, n), x2d.dtype),
        grid=grid,
        in_specs=[
            pl.BlockSpec((tm, tk), lambda i, j, kk: (i, kk)),
            pl.BlockSpec((tk, tn), lambda i, j, kk: (kk, j)),
            pl.BlockSpec((1, tn), lambda i, j, kk: (0, j)),
        ],
        out_specs=pl.BlockSpec((tm, tn), lambda i, j, kk: (i, j)),
        scratch_shapes=[pltpu.VMEM((tm, tn), jnp.float32)],
        compiler_params=pltpu.CompilerParams(
            dimension_semantics=("parallel", "parallel", "arbitrary"),
            vmem_limit_bytes=vmem_limit,
        ),
    )(x2d, w, bias.reshape(1, n))


# ---------------------------------------------------------------------------
# Attention kernel (per (batch, head-group) program)
# ---------------------------------------------------------------------------
def _softmax_last(x, *, approx):
    m = jnp.max(x, axis=-1, keepdims=True)
    e = jnp.exp(x - m)
    denom = jnp.sum(e, axis=-1, keepdims=True)
    if approx:
        # EUP reciprocal frees the VALU slot in the elementwise-heavy region.
        return e * pl.reciprocal(denom, approx=True)
    return e / denom


def _attn_kernel(q_ref, k_ref, v_ref, str_ref, mask_ref, o_ref, o_acc,
                 *, n_heads, d_h):
    neg = jnp.float32(-1e9)
    for hi in range(n_heads):                      # static unroll over the head group
        str_mat = str_ref[hi].astype(jnp.float32)  # (S, S)
        # Mask compared in its native (narrow) dtype; nonzero = keep.
        str_soft = _softmax_last(jnp.where(mask_ref[hi] == 0, neg, str_mat),
                                 approx=True)

        # QK^T contracting the last dims of both operands (no k.T relayout);
        # MXU fed in the native input dtype, f32 accumulation.  The 1/d_h
        # scale is pre-folded into W_q / b_q.
        scores = lax.dot_general(q_ref[hi], k_ref[hi], (((1,), (1,)), ((), ())),
                                 preferred_element_type=jnp.float32)
        scores = scores + str_soft
        # Reference calls `scores.masked_fill(...)` non in-place and drops the
        # result, so the mask is intentionally NOT re-applied to `scores`.
        prob = _softmax_last(scores, approx=False)   # exact denom for final probs
        # TODO(synk): nn.Dropout on `prob` is identity in eval mode; no RNG applied.
        o_acc[:, hi * d_h:(hi + 1) * d_h] = jnp.dot(
            prob.astype(v_ref.dtype), v_ref[hi],
            preferred_element_type=jnp.float32)

    # One lane-dense merged-heads store into the (B, S, H*Dh) output slab.
    o_ref[...] = o_acc[...].astype(o_ref.dtype)


def _choose_heads_per_group(h, d_h, s, qkv_item, str_item, mask_item,
                            out_item, budget):
    """Head-group size: smallest group reaching 128 output lanes that fits the
    VMEM budget, else the largest group that fits (>=1)."""
    def footprint(c):
        per_step = (3 * c * s * d_h * qkv_item           # q, k, v blocks
                    + c * s * s * (str_item + mask_item)  # str + mask blocks
                    + s * c * d_h * out_item)              # output block
        temps = 3 * s * s * 4 + s * c * d_h * 4            # live f32 temporaries
        return 2 * per_step + temps                        # double-buffered I/O

    cands = [c for c in range(1, h + 1) if h % c == 0]
    fitting = [c for c in cands if footprint(c) <= budget]
    if not fitting:
        return 1
    lane_ok = [c for c in fitting if c * d_h >= 128]
    return lane_ok[0] if lane_ok else fitting[-1]


def pallas_mh_attention(q, k, v, str_mat, attn_mask):
    """q/k/v: (B,H,S,Dh); str_mat: (B,H,S,S); attn_mask: (B,H,S,S) any numeric
    dtype (int8/bool recommended).  Returns merged-heads output (B, S, H*Dh)."""
    b, h, s, d_h = q.shape
    budget = _vmem_budget_bytes()
    hpg = _choose_heads_per_group(h, d_h, s, q.dtype.itemsize,
                                  str_mat.dtype.itemsize,
                                  attn_mask.dtype.itemsize,
                                  q.dtype.itemsize, budget)
    n_groups = h // hpg
    f = h * d_h
    kernel = functools.partial(_attn_kernel, n_heads=hpg, d_h=d_h)

    qkv_spec = pl.BlockSpec((None, hpg, s, d_h), lambda bi, gi: (bi, gi, 0, 0))
    mat_spec = pl.BlockSpec((None, hpg, s, s), lambda bi, gi: (bi, gi, 0, 0))
    out_spec = pl.BlockSpec((None, s, hpg * d_h), lambda bi, gi: (bi, 0, gi))

    per_step = (3 * hpg * s * d_h * q.dtype.itemsize
                + hpg * s * s * (str_mat.dtype.itemsize + attn_mask.dtype.itemsize)
                + s * hpg * d_h * q.dtype.itemsize)
    temps = 3 * s * s * 4 + s * hpg * d_h * 4
    vmem_limit = int(min(budget, max(16 << 20, 2 * per_step + temps + (4 << 20))))

    # TODO(synk): for long sequences (roughly S >= ~1k on v7x 64 MiB VMEM),
    # KV-tile the score softmax flash-style instead of holding full (S,S) tiles.
    return pl.pallas_call(
        kernel,
        out_shape=jax.ShapeDtypeStruct((b, s, f), q.dtype),
        grid=(b, n_groups),
        in_specs=[qkv_spec, qkv_spec, qkv_spec, mat_spec, mat_spec],
        out_specs=out_spec,
        scratch_shapes=[pltpu.VMEM((s, hpg * d_h), jnp.float32)],
        compiler_params=pltpu.CompilerParams(
            # Both axes "parallel": megacore (v7x 2 TCs) shards (b, groups).
            dimension_semantics=("parallel", "parallel"),
            vmem_limit_bytes=vmem_limit,
        ),
    )(q, k, v, str_mat, attn_mask)


# ---------------------------------------------------------------------------
# Module wrapper (parameter setup + glue in plain JAX)
# ---------------------------------------------------------------------------
class MHInrAttnPallas:
    def __init__(self, features, n_head, dropout, key):
        assert features % n_head == 0
        self.features = features
        self.n_head = n_head
        self.d_h = features // n_head
        self.dropout = dropout  # identity in eval mode
        bound = 1.0 / math.sqrt(features)  # torch nn.Linear default init range
        keys = jax.random.split(key, 8)
        self.weights, self.biases = [], []
        for i in range(4):  # q, k, v, out projections
            w = jax.random.uniform(keys[2 * i], (features, features),
                                   jnp.float32, minval=-bound, maxval=bound)
            bb = jax.random.uniform(keys[2 * i + 1], (features,),
                                    jnp.float32, minval=-bound, maxval=bound)
            self.weights.append(w)
            self.biases.append(bb)
        # Fold the reference's 1/d_h score scale into the q projection once
        # (free parameter transform; removes S*Dh VALU mults per head per step).
        inv_scale = 1.0 / self.d_h
        self.wq_scaled = self.weights[0] * inv_scale
        self.bq_scaled = self.biases[0] * inv_scale

    def __call__(self, xs, str_mat, attn_mask):
        # attn_mask may be any numeric dtype; pass int8/bool upstream to cut
        # the dominant (B,H,S,S) HBM read (kernel only tests `mask == 0`).
        # On v5e/v6e, passing str_mat as bfloat16 halves its HBM stream too
        # (the kernel upcasts per-tile).
        xq, xk, xv = xs                     # each (B, S, F)
        b, s, f = xq.shape
        h, d_h = self.n_head, self.d_h

        def split_heads(y2d):
            # matches torch `.view(b, n_head, -1, d_h)`: plain reshape
            return y2d.reshape(b, h, s, d_h)

        if xq is xk and xk is xv:
            # Self-attention: fused single QKV projection (1x X HBM read,
            # one kernel launch instead of three).
            w_qkv = jnp.concatenate(
                [self.wq_scaled, self.weights[1], self.weights[2]], axis=1)
            b_qkv = jnp.concatenate(
                [self.bq_scaled, self.biases[1], self.biases[2]])
            y = pallas_linear(xq.reshape(b * s, f), w_qkv, b_qkv)
            q = split_heads(y[:, :f])
            k = split_heads(y[:, f:2 * f])
            v = split_heads(y[:, 2 * f:])
        else:
            q = split_heads(pallas_linear(xq.reshape(b * s, f),
                                          self.wq_scaled, self.bq_scaled))
            k = split_heads(pallas_linear(xk.reshape(b * s, f),
                                          self.weights[1], self.biases[1]))
            v = split_heads(pallas_linear(xv.reshape(b * s, f),
                                          self.weights[2], self.biases[2]))

        o = pallas_mh_attention(q, k, v, str_mat, attn_mask)   # (B, S, H*Dh)
        out = pallas_linear(o.reshape(b * s, f), self.weights[3], self.biases[3])
        return out.reshape(b, s, f)


# ---------------------------------------------------------------------------
# Pure-JAX reference (for correctness check)
# ---------------------------------------------------------------------------
def reference_forward(module, xs, str_mat, attn_mask):
    xq, xk, xv = xs
    b, s, f = xq.shape
    h, d_h = module.n_head, module.d_h

    def proj(x, w, bias):
        return (x.reshape(b * s, f) @ w + bias).reshape(b, h, s, d_h)

    q = proj(xq, module.weights[0], module.biases[0])
    k = proj(xk, module.weights[1], module.biases[1])
    v = proj(xv, module.weights[2], module.biases[2])

    str_m = jnp.where(attn_mask == 0, -1e9, str_mat)
    str_soft = jax.nn.softmax(str_m, axis=-1)
    scores = jnp.einsum("bhqd,bhkd->bhqk", q, k) / d_h + str_soft
    prob = jax.nn.softmax(scores, axis=-1)
    o = jnp.einsum("bhqk,bhkd->bhqd", prob, v)
    o = jnp.transpose(o, (0, 2, 1, 3)).reshape(b, s, f)
    return (o.reshape(b * s, f) @ module.weights[3] + module.biases[3]).reshape(b, s, f)


# ---------------------------------------------------------------------------
if __name__ == "__main__":
    B, S, F, H = 2, 8, 32, 4

    key = jax.random.PRNGKey(0)
    k_params, k_xq, k_xk, k_xv, k_str, k_mask = jax.random.split(key, 6)

    module = MHInrAttnPallas(features=F, n_head=H, dropout=0.0, key=k_params)

    xq = jax.random.normal(k_xq, (B, S, F), jnp.float32)
    xk = jax.random.normal(k_xk, (B, S, F), jnp.float32)
    xv = jax.random.normal(k_xv, (B, S, F), jnp.float32)
    str_mat = jax.random.normal(k_str, (B, H, S, S), jnp.float32)
    # int8 0/1 mask (nonzero = keep); guarantee at least one unmasked entry per
    # row (diagonal) so no row softmaxes over all -1e9.
    attn_mask = (jax.random.uniform(k_mask, (B, H, S, S)) > 0.3).astype(jnp.int8)
    attn_mask = jnp.maximum(attn_mask, jnp.eye(S, dtype=jnp.int8)[None, None])

    out = module((xq, xk, xv), str_mat, attn_mask)
    out = jax.block_until_ready(out)

    ref = reference_forward(module, (xq, xk, xv), str_mat, attn_mask)
    assert out.shape == (B, S, F)
    # Tolerance absorbs the approx (EUP) reciprocal used in the str softmax.
    assert jnp.allclose(out, ref, atol=1e-2, rtol=1e-2), (
        "mismatch vs reference: max abs err %e" % float(jnp.max(jnp.abs(out - ref))))

    print("KERNEL_OK")
</pallas_src>

<mosaic_0001>
module attributes {stable_mosaic.version = 11 : i64} {
  func.func @_linear_kernel(%arg0: i32, %arg1: i32, %arg2: i32, %arg3: memref<16x32xf32, #tpu.memory_space<vmem>>, %arg4: memref<32x32xf32, #tpu.memory_space<vmem>>, %arg5: memref<1x32xf32, #tpu.memory_space<vmem>>, %arg6: memref<16x32xf32, #tpu.memory_space<vmem>>, %arg7: memref<16x32xf32, #tpu.memory_space<vmem>>) attributes {dimension_semantics = [#tpu.dimension_semantics<parallel>, #tpu.dimension_semantics<parallel>, #tpu.dimension_semantics<arbitrary>], iteration_bounds = array<i64: 1, 1, 1>, scalar_prefetch = 0 : i64, scratch_operands = 1 : i64, tpu.core_type = #tpu.core_type<tc>, window_params = [{transform_indices = @transform_0, window_bounds = array<i64: 16, 32>}, {transform_indices = @transform_1, window_bounds = array<i64: 32, 32>}, {transform_indices = @transform_2, window_bounds = array<i64: 1, 32>}, {transform_indices = @transform_3, window_bounds = array<i64: 16, 32>}]} {
    %c0_i32 = arith.constant 0 : i32
    %0 = arith.cmpi eq, %arg2, %c0_i32 : i32
    %1 = arith.extui %0 : i1 to i32
    %c0_i32_0 = arith.constant 0 : i32
    %2 = arith.cmpi ne, %1, %c0_i32_0 : i32
    scf.if %2 {
      %cst_10 = arith.constant 0.000000e+00 : f32
      %12 = vector.broadcast %cst_10 : f32 to vector<16x32xf32>
      %c0_11 = arith.constant 0 : index
      %c0_12 = arith.constant 0 : index
      %13 = vector.load %arg7[%c0_11, %c0_12] : memref<16x32xf32, #tpu.memory_space<vmem>>, vector<16x32xf32>
      tpu.vector_store %arg7[%c0_11, %c0_12], %12 {strides = array<i32>} : memref<16x32xf32, #tpu.memory_space<vmem>>, vector<16x32xf32>,
    } else {
    }
    %c0 = arith.constant 0 : index
    %c0_1 = arith.constant 0 : index
    %3 = vector.load %arg7[%c0, %c0_1] : memref<16x32xf32, #tpu.memory_space<vmem>>, vector<16x32xf32>
    %c0_2 = arith.constant 0 : index
    %c0_3 = arith.constant 0 : index
    %4 = vector.load %arg3[%c0_2, %c0_3] : memref<16x32xf32, #tpu.memory_space<vmem>>, vector<16x32xf32>
    %c0_4 = arith.constant 0 : index
    %c0_5 = arith.constant 0 : index
    %5 = vector.load %arg4[%c0_4, %c0_5] : memref<32x32xf32, #tpu.memory_space<vmem>>, vector<32x32xf32>
    %cst = arith.constant dense<0.000000e+00> : vector<16x32xf32>
    %6 = tpu.matmul %4, %5, %cst {dimension_numbers = #tpu.dot_dimension_numbers<[1], [0], [0], [1], [0, 0, 1, 1], [], []>} : vector<16x32xf32>, vector<32x32xf32>, vector<16x32xf32> -> vector<16x32xf32>
    %7 = arith.addf %3, %6 : vector<16x32xf32>
    %c0_6 = arith.constant 0 : index
    %c0_7 = arith.constant 0 : index
    %8 = vector.load %arg7[%c0_6, %c0_7] : memref<16x32xf32, #tpu.memory_space<vmem>>, vector<16x32xf32>
    tpu.vector_store %arg7[%c0_6, %c0_7], %7 {strides = array<i32>} : memref<16x32xf32, #tpu.memory_space<vmem>>, vector<16x32xf32>,
    %c0_i32_8 = arith.constant 0 : i32
    %9 = arith.cmpi eq, %arg2, %c0_i32_8 : i32
    %10 = arith.extui %9 : i1 to i32
    %c0_i32_9 = arith.constant 0 : i32
    %11 = arith.cmpi ne, %10, %c0_i32_9 : i32
    scf.if %11 {
      %c0_10 = arith.constant 0 : index
      %c0_11 = arith.constant 0 : index
      %12 = vector.load %arg7[%c0_10, %c0_11] : memref<16x32xf32, #tpu.memory_space<vmem>>, vector<16x32xf32>
      %c0_12 = arith.constant 0 : index
      %c0_13 = arith.constant 0 : index
      %13 = vector.load %arg5[%c0_12, %c0_13] : memref<1x32xf32, #tpu.memory_space<vmem>>, vector<1x32xf32>
      %14 = vector.broadcast %13 : vector<1x32xf32> to vector<16x32xf32>
      %15 = arith.addf %12, %14 : vector<16x32xf32>
      %c0_14 = arith.constant 0 : index
      %c0_15 = arith.constant 0 : index
      %16 = vector.load %arg6[%c0_14, %c0_15] : memref<16x32xf32, #tpu.memory_space<vmem>>, vector<16x32xf32>
      tpu.vector_store %arg6[%c0_14, %c0_15], %15 {strides = array<i32>} : memref<16x32xf32, #tpu.memory_space<vmem>>, vector<16x32xf32>,
    } else {
    }
    return
  }
  func.func @transform_0(%arg0: i32, %arg1: i32, %arg2: i32) -> (i32, i32) {
    %c0_i32 = arith.constant 0 : i32
    return %arg0, %arg2 : i32, i32
  }
  func.func @transform_1(%arg0: i32, %arg1: i32, %arg2: i32) -> (i32, i32) {
    %c0_i32 = arith.constant 0 : i32
    return %arg2, %arg1 : i32, i32
  }
  func.func @transform_2(%arg0: i32, %arg1: i32, %arg2: i32) -> (i32, i32) {
    %c0_i32 = arith.constant 0 : i32
    %c0_i32_0 = arith.constant 0 : i32
    return %c0_i32, %arg1 : i32, i32
  }
  func.func @transform_3(%arg0: i32, %arg1: i32, %arg2: i32) -> (i32, i32) {
    %c0_i32 = arith.constant 0 : i32
    return %arg0, %arg1 : i32, i32
  }
}

</mosaic_0001>

<llo_original>
// kernel: tpu_custom_call.1
$region0: #{tpu_custom_call.1}
  #allocation0 [shape = 'u32[]', space=smem, size = 0x4, offset = 0x4, fixed_abs, tag = 'smem constant byte address 0x4 - core index']
  #allocation1 [shape = 'u32[144,128]{1,0:T(1,128)}', space=vmem, size = 0x12000, scoped, tag = 'internal scratch']
  #allocation2 [shape = 'f32[16,32]{1,0:T(8,128)}', space=vmem, size = 0x2000, scoped, tag = 'scratch operand']
  %s0 = inlined_call_operand.hbm [shape: f32[16,32], index: 0, kind: input, shape index: {}]
  %s1 = inlined_call_operand.hbm [shape: f32[32,32], index: 1, kind: input, shape index: {}]
  %s2 = inlined_call_operand.vmem [shape: f32[1,32], index: 2, kind: input, shape index: {}]
  %s3 = inlined_call_operand.hbm [shape: f32[16,32], index: 3, kind: output, shape index: {}]
  %s4 = sld [smem:[#allocation0]]
  $region38: #{tpu_custom_call.1} parent=0
    _
  %s6 = ssub.s32 1, %s4
  %s7 = scalar_select 0, %s6, %s4
  $region1: #{tpu_custom_call.1} parent=0
    #allocation3 [shape = 'u8[8192]{0}', space=vmem, size = 0x2000, scoped, tag = 'input window, operand 0, single buffered']
    #allocation4 [shape = 's32[1]{0}', space=sflag, size = 0x4, scoped, tag = 'scoped memory for tpu_custom_call.1']
    #allocation5 [shape = 's32[1]{0}', space=sflag, size = 0x4, scoped, tag = 'scoped memory for tpu_custom_call.1']
    #allocation6 [shape = 'u8[16384]{0}', space=vmem, size = 0x4000, scoped, tag = 'input window, operand 1, single buffered']
    #allocation7 [shape = 's32[1]{0}', space=sflag, size = 0x4, scoped, tag = 'scoped memory for tpu_custom_call.1']
    #allocation8 [shape = 'u8[8192]{0}', space=vmem, size = 0x2000, scoped, tag = 'output window, operand 0, single buffered']
    %8 = vsyncpa [#allocation4], 0
    %9 = vsyncpa [#allocation7], 0
    %10 = vsyncpa [#allocation5], 0
    // Predicated region
    $region2: #{tpu_custom_call.1} parent=1 // pred_check
      _
    $region3: #{tpu_custom_call.1} parent=1 // pred_check_branch
      %12 = sbr.rel (0) target = $region5
    $region4: #{tpu_custom_call.1} parent=1 // pred_region
      %s14 = ssub.s32 256, 256
      %15 = vsyncadd [#allocation4], %s14
      %s16 = sshll.u32 [#allocation3], 4
      %s17 = int_to_ptr.vmem [resolvable:$true] %s16
      %22 = dma.hbm_to_vmem [thread:$0]  %s0, 256, %s17, [#allocation4], 128, 128, 8
    $region5: #{tpu_custom_call.1} parent=1 // pred_fallthru
      _
    // Predicated region
    $region6: #{tpu_custom_call.1} parent=1 // pred_check
      _
    $region7: #{tpu_custom_call.1} parent=1 // pred_check_branch
      %24 = sbr.rel (0) target = $region9
    $region8: #{tpu_custom_call.1} parent=1 // pred_region
      %s26 = ssub.s32 512, 512
      %27 = vsyncadd [#allocation7], %s26
      %s28 = sshll.u32 [#allocation6], 4
      %s29 = int_to_ptr.vmem [resolvable:$true] %s28
      %34 = dma.hbm_to_vmem [thread:$0]  %s1, 512, %s29, [#allocation7], 128, 128, 8
    $region9: #{tpu_custom_call.1} parent=1 // pred_fallthru
      _
    // Predicated region
    $region10: #{tpu_custom_call.1} parent=1 // pred_check
      _
    $region11: #{tpu_custom_call.1} parent=1 // pred_check_branch
      %36 = sbr.rel (0) target = $region13
    $region12: #{tpu_custom_call.1} parent=1 // pred_region
      _
    $region13: #{tpu_custom_call.1} parent=1 // pred_fallthru
      _
    // Predicated region
    $region14: #{tpu_custom_call.1} parent=1 // pred_check
      _
    $region15: #{tpu_custom_call.1} parent=1 // pred_check_branch
      %38 = sbr.rel (0) target = $region17
    $region16: #{tpu_custom_call.1} parent=1 // pred_region
      %39 = dma.done [#allocation4], 256
    $region17: #{tpu_custom_call.1} parent=1 // pred_fallthru
      _
    // Predicated region
    $region18: #{tpu_custom_call.1} parent=1 // pred_check
      _
    $region19: #{tpu_custom_call.1} parent=1 // pred_check_branch
      %41 = sbr.rel (0) target = $region21
    $region20: #{tpu_custom_call.1} parent=1 // pred_region
      %42 = dma.done [#allocation7], 512
    $region21: #{tpu_custom_call.1} parent=1 // pred_fallthru
      _
    %p43 = scmp.eq.s32.totalorder 0, 0
    // Predicated region
    $region22: #{tpu_custom_call.1} parent=1 // pred_check
      %p44 = pneg %p43
    $region23: #{tpu_custom_call.1} parent=1 // pred_check_branch
      %46 = sbr.rel (%p44) target = $region25
    $region24: #{tpu_custom_call.1} parent=1 // pred_region
      %vm47 = vcmask 261120
      %48 = vst.msk [vmem:[#allocation2] sm:$0xff] %vm47, 0.0
      %49 = vst.msk [vmem:[#allocation2 + $0x8] sm:$0xff] %vm47, 0.0
    $region25: #{tpu_custom_call.1} parent=1 // pred_fallthru
      _
    %v50 = vld [vmem:[#allocation2] sm:$0xff]
    %v51 = vld [vmem:[#allocation2 + $0x8] sm:$0xff]
    %v52 = vld [vmem:[#allocation3] sm:$0xff]
    %v53 = vld [vmem:[#allocation3 + $0x8] sm:$0xff]
    %v54 = vld [vmem:[#allocation6] sm:$0xff]
    %v55 = vld [vmem:[#allocation6 + $0x8] sm:$0xff]
    %v56 = vld [vmem:[#allocation6 + $0x10] sm:$0xff]
    %v57 = vld [vmem:[#allocation6 + $0x18] sm:$0xff]
    %vm58 = vcmask 261120
    %v60 = vsel %vm58, %v52, 0
    %v63 = vsel %vm58, %v53, 0
    %65 = vmatprep.subr.mxu0 0.0
    %66 = vmatpush1.msra.mxu0 0.0
    %67 = vmatprep.subr.mxu0 0.0
    %68 = vmatpush1.msra.mxu0 0.0
    %69 = vmatprep.subr.mxu0 0.0
    %70 = vmatpush1.msra.mxu0 0.0
    %71 = vmatprep.subr.mxu0 0.0
    %72 = vmatpush1.msra.mxu0 0.0
    %73 = vmatprep.subr.mxu0 0.0
    %74 = vmatpush1.msra.mxu0 0.0
    %75 = vmatprep.subr.mxu0 0.0
    %76 = vmatpush1.msra.mxu0 0.0
    %77 = vmatprep.subr.mxu0 0.0
    %78 = vmatpush1.msra.mxu0 0.0
    %79 = vmatprep.subr.mxu0 0.0
    %80 = vmatpush1.msra.mxu0 0.0
    %81 = vmatprep.subr.mxu0 0.0
    %82 = vmatpush1.msra.mxu0 0.0
    %83 = vmatprep.subr.mxu0 0.0
    %84 = vmatpush1.msra.mxu0 0.0
    %85 = vmatprep.subr.mxu0 0.0
    %86 = vmatpush1.msra.mxu0 0.0
    %87 = vmatprep.subr.mxu0 0.0
    %88 = vmatpush1.msra.mxu0 0.0
    %89 = vmatprep.subr.mxu0 0.0
    %90 = vmatpush1.msra.mxu0 %v57
    %91 = vmatprep.subr.mxu0 0.0
    %92 = vmatpush1.msra.mxu0 %v56
    %93 = vmatprep.subr.mxu0 0.0
    %94 = vmatpush1.msra.mxu0 %v55
    %95 = vmatprep.subr.mxu0 0.0
    %96 = vmatpush1.msra.mxu0 %v54
    %97 = vmatprep.subr.mxu0 0.0
    %98 = vmatpush2.msra.mxu0 0.0
    %99 = vmatprep.subr.mxu0 0.0
    %100 = vmatpush2.msra.mxu0 0.0
    %101 = vmatprep.subr.mxu0 0.0
    %102 = vmatpush2.msra.mxu0 0.0
    %103 = vmatprep.subr.mxu0 0.0
    %104 = vmatpush2.msra.mxu0 0.0
    %105 = vmatprep.subr.mxu0 0.0
    %106 = vmatpush2.msra.mxu0 0.0
    %107 = vmatprep.subr.mxu0 0.0
    %108 = vmatpush2.msra.mxu0 0.0
    %109 = vmatprep.subr.mxu0 0.0
    %110 = vmatpush2.msra.mxu0 0.0
    %111 = vmatprep.subr.mxu0 0.0
    %112 = vmatpush2.msra.mxu0 0.0
    %113 = vmatprep.subr.mxu0 0.0
    %114 = vmatpush2.msra.mxu0 0.0
    %115 = vmatprep.subr.mxu0 0.0
    %116 = vmatpush2.msra.mxu0 0.0
    %117 = vmatprep.subr.mxu0 0.0
    %118 = vmatpush2.msra.mxu0 0.0
    %119 = vmatprep.subr.mxu0 0.0
    %120 = vmatpush2.msra.mxu0 0.0
    %121 = vmatprep.subr.mxu0 0.0
    %122 = vmatpush2.msra.mxu0 0.0
    %123 = vmatprep.subr.mxu0 0.0
    %124 = vmatpush2.msra.mxu0 0.0
    %125 = vmatprep.subr.mxu0 0.0
    %126 = vmatpush2.msra.mxu0 0.0
    %127 = vmatprep.subr.mxu0 0.0
    %128 = vmatpush2.msra.mxu0 0.0
    %129 = vmatprep.mubr.f32.mxu0 0.0
    %130 = vmatmul.mubr.f32.gmra.mxu0 %v60
    %v131 = vpop.f32.mrf.mxu0
    %v132 = vadd.f32 0.0, %v131
    %v133 = vpop.f32.mrf.mxu0
    %134 = vmatprep.mubr.f32.mxu0 0.0
    %135 = vmatmul.mubr.f32.gmra.mxu0 %v63
    %v136 = vpop.f32.mrf.mxu0
    %v137 = vadd.f32 0.0, %v136
    %v138 = vpop.f32.mrf.mxu0
    %139 = vdwg.mxu0
    %v140 = vadd.f32 %v50, %v132
    %v141 = vadd.f32 %v51, %v137
    %142 = vst.msk [vmem:[#allocation2] sm:$0xff] %vm58, %v140
    %143 = vst.msk [vmem:[#allocation2 + $0x8] sm:$0xff] %vm58, %v141
    // Predicated region
    $region26: #{tpu_custom_call.1} parent=1 // pred_check
      %p144 = pneg %p43
    $region27: #{tpu_custom_call.1} parent=1 // pred_check_branch
      %146 = sbr.rel (%p144) target = $region29
    $region28: #{tpu_custom_call.1} parent=1 // pred_region
      %v147 = vld [vmem:[#allocation2] sm:$0xff]
      %v148 = vld [vmem:[#allocation2 + $0x8] sm:$0xff]
      %v149 = vld [vmem:[%s2] sm:$0x1]
      %v151 = vlaneseq
      %v152 = vshrl.u32 %v151, 7
      %v153 = vsub.s32 0, %v152
      %v154 = vrot.slane %v149, %v153
      %v156 = vadd.f32 %v147, %v154
      %v157 = vadd.f32 %v148, %v154
      %158 = vst.msk [vmem:[#allocation8] sm:$0xff] %vm58, %v156
      %159 = vst.msk [vmem:[#allocation8 + $0x8] sm:$0xff] %vm58, %v157
    $region29: #{tpu_custom_call.1} parent=1 // pred_fallthru
      _
    // Predicated region
    $region30: #{tpu_custom_call.1} parent=1 // pred_check
      _
    $region31: #{tpu_custom_call.1} parent=1 // pred_check_branch
      %161 = sbr.rel (0) target = $region33
    $region32: #{tpu_custom_call.1} parent=1 // pred_region
      %s163 = ssub.s32 256, 256
      %164 = vsyncadd [#allocation5], %s163
      %s165 = sshll.u32 [#allocation8], 4
      %s166 = int_to_ptr.vmem [resolvable:$true] %s165
      %171 = dma.vmem_to_hbm [thread:$0]  %s166, 256, %s3, [#allocation5], 128, 128, 8
    $region33: #{tpu_custom_call.1} parent=1 // pred_fallthru
      _
    // Predicated region
    $region34: #{tpu_custom_call.1} parent=1 // pred_check
      _
    $region35: #{tpu_custom_call.1} parent=1 // pred_check_branch
      %173 = sbr.rel (0) target = $region37
    $region36: #{tpu_custom_call.1} parent=1 // pred_region
      %174 = dma.done [#allocation5], 256
    $region37: #{tpu_custom_call.1} parent=1 // pred_fallthru
      _
    %175 = vsyncpa [#allocation4], 1
    %176 = vsyncpa [#allocation7], 1
    %177 = vsyncpa [#allocation5], 1

</llo_original>
